<compile_context>
chip_gen: v5e
topology: v5e:2x2
jax: 0.10.0
libtpu: 0.0.40
codegen_flags: <defaults>
</compile_context>

<pallas_src>
import jax
import jax.numpy as jnp
from jax.experimental import pallas as pl
from jax.experimental.pallas import tpu as pltpu


def _cdiv(a, b):
    return (a + b - 1) // b


def _make_lp_pool_kernel(pnorm, kH, kW, dH, dW, Ho, Wo):
    p = float(pnorm)
    is_int_p = (p == int(p)) and p > 0
    ip = int(p) if is_int_p else None
    inv_p = 1.0 / p

    def _pow(v):
        # Integer exponents via integer_pow / multiplies (safe for negative inputs,
        # matching torch semantics for e.g. pnorm=2).
        if is_int_p and ip == 1:
            return v
        if is_int_p and ip == 2:
            return v * v
        if is_int_p:
            return v ** ip
        # TODO(synk): non-integer pnorm with negative inputs yields NaN (matches torch.pow).
        return jnp.power(v, p)

    def _root(s):
        if is_int_p and ip == 1:
            return s
        if is_int_p and ip == 2:
            return jnp.sqrt(s)
        return jnp.power(s, inv_p)

    def _ds(start, size, stride):
        return pl.ds(start, size) if stride == 1 else pl.ds(start, size, stride=stride)

    def kernel(x_ref, o_ref):
        # x_ref: (H, W, TILE_L)   o_ref: (Ho, Wo, TILE_L); lanes = flattened batch.
        acc = None
        for kh in range(kH):
            for kw in range(kW):
                xs = x_ref[_ds(kh, Ho, dH), _ds(kw, Wo, dW), :].astype(jnp.float32)
                xp = _pow(xs)
                acc = xp if acc is None else acc + xp
        o_ref[...] = _root(acc).astype(o_ref.dtype)

    return kernel


def spatial_lp_pooling(x, pnorm, kW, kH, dW, dH):
    """LP pooling matching the PyTorch SpatialLPPooling module. x: (N, C, H, W)."""
    N, C, H, W = x.shape
    Ho = (H - kH) // dH + 1
    Wo = (W - kW) // dW + 1
    B = N * C

    # Channel-last, lane-dense layout: (H, W, B).  Pure layout plumbing in the wrapper.
    x_l = jnp.transpose(x.reshape(B, H, W), (1, 2, 0))

    # Tile the lane axis in multiples of 128, targeting ~2 MiB per input block so that
    # double-buffered input + output fits default scoped VMEM on all generations
    # (v5e 16 MiB, v6e 32 MiB, v7x 32 MiB) while amortizing per-step overhead.
    LANE = 128
    itemsize = x.dtype.itemsize
    chunk_bytes = H * W * LANE * itemsize
    target_bytes = 2 * 1024 * 1024
    max_chunks = max(1, target_bytes // chunk_bytes)
    chunks_per_tile = int(min(max(1, _cdiv(B, LANE)), max_chunks))
    TILE_L = LANE * chunks_per_tile

    B_pad = _cdiv(B, TILE_L) * TILE_L
    if B_pad != B:
        # Zero padding is harmless: pooled sum is 0 -> root(0) = 0; padded lanes are sliced off.
        x_l = jnp.pad(x_l, ((0, 0), (0, 0), (0, B_pad - B)))

    grid = (B_pad // TILE_L,)

    out_l = pl.pallas_call(
        _make_lp_pool_kernel(pnorm, kH, kW, dH, dW, Ho, Wo),
        out_shape=jax.ShapeDtypeStruct((Ho, Wo, B_pad), x.dtype),
        grid_spec=pltpu.PrefetchScalarGridSpec(
            num_scalar_prefetch=0,
            grid=grid,
            in_specs=[pl.BlockSpec((H, W, TILE_L), lambda i: (0, 0, i))],
            out_specs=pl.BlockSpec((Ho, Wo, TILE_L), lambda i: (0, 0, i)),
        ),
        compiler_params=pltpu.CompilerParams(dimension_semantics=("parallel",)),
    )(x_l)

    # Back to NCHW.
    out = jnp.transpose(out_l[:, :, :B], (2, 0, 1)).reshape(N, C, Ho, Wo)
    return out


if __name__ == "__main__":
    # Module config (synthetic, deterministic): pnorm=2, 2x2 window, stride 2.
    pnorm, kW, kH, dW, dH = 2, 2, 2, 2, 2

    key = jax.random.PRNGKey(0)
    x = jax.random.normal(key, (2, 4, 16, 16), dtype=jnp.float32)  # NCHW

    out = spatial_lp_pooling(x, pnorm, kW, kH, dW, dH)
    out = jax.block_until_ready(out)

    # Pure-JAX reference of the PyTorch forward (stride == kernel -> reshape avg-pool).
    N, C, H, W = x.shape
    Ho, Wo = (H - kH) // dH + 1, (W - kW) // dW + 1
    xp = x.astype(jnp.float32) ** pnorm
    ref = xp.reshape(N, C, Ho, kH, Wo, kW).mean(axis=(3, 5)) * (kW * kH)
    ref = ref ** (1.0 / pnorm)

    assert out.shape == (N, C, Ho, Wo), out.shape
    err = float(jnp.max(jnp.abs(out.astype(jnp.float32) - ref)))
    assert jnp.allclose(out.astype(jnp.float32), ref, rtol=1e-5, atol=1e-5), err
    print("KERNEL_OK")
</pallas_src>

<mosaic_0001>
module attributes {stable_mosaic.version = 11 : i64} {
  func.func @kernel(%arg0: i32, %arg1: memref<16x16x128xf32, #tpu.memory_space<vmem>>, %arg2: memref<8x8x128xf32, #tpu.memory_space<vmem>>) attributes {dimension_semantics = [#tpu.dimension_semantics<parallel>], iteration_bounds = array<i64: 1>, scalar_prefetch = 0 : i64, scratch_operands = 0 : i64, tpu.core_type = #tpu.core_type<tc>, window_params = [{transform_indices = @transform_0, window_bounds = array<i64: 16, 16, 128>}, {transform_indices = @transform_1, window_bounds = array<i64: 8, 8, 128>}]} {
    %c0 = arith.constant 0 : index
    %c0_0 = arith.constant 0 : index
    %c0_1 = arith.constant 0 : index
    %0 = tpu.strided_load %arg1[%c0, %c0_0, %c0_1] {strides = array<i32: 2, 2, 1>} : memref<16x16x128xf32, #tpu.memory_space<vmem>>, vector<8x8x128xf32>
    %1 = arith.mulf %0, %0 : vector<8x8x128xf32>
    %c0_2 = arith.constant 0 : index
    %c1 = arith.constant 1 : index
    %c0_3 = arith.constant 0 : index
    %2 = tpu.strided_load %arg1[%c0_2, %c1, %c0_3] {strides = array<i32: 2, 2, 1>} : memref<16x16x128xf32, #tpu.memory_space<vmem>>, vector<8x8x128xf32>
    %3 = arith.mulf %2, %2 : vector<8x8x128xf32>
    %4 = arith.addf %1, %3 : vector<8x8x128xf32>
    %c1_4 = arith.constant 1 : index
    %c0_5 = arith.constant 0 : index
    %c0_6 = arith.constant 0 : index
    %5 = tpu.strided_load %arg1[%c1_4, %c0_5, %c0_6] {strides = array<i32: 2, 2, 1>} : memref<16x16x128xf32, #tpu.memory_space<vmem>>, vector<8x8x128xf32>
    %6 = arith.mulf %5, %5 : vector<8x8x128xf32>
    %7 = arith.addf %4, %6 : vector<8x8x128xf32>
    %c1_7 = arith.constant 1 : index
    %c1_8 = arith.constant 1 : index
    %c0_9 = arith.constant 0 : index
    %8 = tpu.strided_load %arg1[%c1_7, %c1_8, %c0_9] {strides = array<i32: 2, 2, 1>} : memref<16x16x128xf32, #tpu.memory_space<vmem>>, vector<8x8x128xf32>
    %9 = arith.mulf %8, %8 : vector<8x8x128xf32>
    %10 = arith.addf %7, %9 : vector<8x8x128xf32>
    %11 = math.sqrt %10 : vector<8x8x128xf32>
    %c0_10 = arith.constant 0 : index
    %c0_11 = arith.constant 0 : index
    %c0_12 = arith.constant 0 : index
    %12 = vector.load %arg2[%c0_10, %c0_11, %c0_12] : memref<8x8x128xf32, #tpu.memory_space<vmem>>, vector<8x8x128xf32>
    tpu.vector_store %arg2[%c0_10, %c0_11, %c0_12], %11 {strides = array<i32>} : memref<8x8x128xf32, #tpu.memory_space<vmem>>, vector<8x8x128xf32>,
    return
  }
  func.func @transform_0(%arg0: i32) -> (i32, i32, i32) {
    %c0_i32 = arith.constant 0 : i32
    %c0_i32_0 = arith.constant 0 : i32
    %c0_i32_1 = arith.constant 0 : i32
    return %c0_i32, %c0_i32_0, %arg0 : i32, i32, i32
  }
  func.func @transform_1(%arg0: i32) -> (i32, i32, i32) {
    %c0_i32 = arith.constant 0 : i32
    %c0_i32_0 = arith.constant 0 : i32
    %c0_i32_1 = arith.constant 0 : i32
    return %c0_i32, %c0_i32_0, %arg0 : i32, i32, i32
  }
}

</mosaic_0001>

<llo_original>
// kernel: tpu_custom_call.1
$region0: #{tpu_custom_call.1}
  #allocation0 [shape = 'u32[]', space=smem, size = 0x4, offset = 0x4, fixed_abs, tag = 'smem constant byte address 0x4 - core index']
  #allocation1 [shape = 'u32[72,128]{1,0:T(1,128)}', space=vmem, size = 0x9000, scoped, tag = 'internal scratch']
  %s0 = inlined_call_operand.hbm [shape: f32[16,16,128], index: 0, kind: input, shape index: {}]
  %s1 = inlined_call_operand.hbm [shape: f32[8,8,128], index: 1, kind: output, shape index: {}]
  %s2 = sld [smem:[#allocation0]]
  $region18: #{tpu_custom_call.1} parent=0
    _
  %s4 = ssub.s32 1, %s2
  %s5 = scalar_select 0, %s4, %s2
  $region1: #{tpu_custom_call.1} parent=0
    #allocation2 [shape = 'u8[131072]{0}', space=vmem, size = 0x20000, scoped, tag = 'input window, operand 0, single buffered']
    #allocation3 [shape = 's32[1]{0}', space=sflag, size = 0x4, scoped, tag = 'scoped memory for tpu_custom_call.1']
    #allocation4 [shape = 's32[1]{0}', space=sflag, size = 0x4, scoped, tag = 'scoped memory for tpu_custom_call.1']
    #allocation5 [shape = 'u8[32768]{0}', space=vmem, size = 0x8000, scoped, tag = 'output window, operand 0, single buffered']
    %6 = vsyncpa [#allocation3], 0
    %7 = vsyncpa [#allocation4], 0
    // Predicated region
    $region2: #{tpu_custom_call.1} parent=1 // pred_check
      _
    $region3: #{tpu_custom_call.1} parent=1 // pred_check_branch
      %9 = sbr.rel (0) target = $region5
    $region4: #{tpu_custom_call.1} parent=1 // pred_region
      %11 = vsyncadd [#allocation3], 0
      %s12 = sshll.u32 %s0, 4
      %s13 = int_to_ptr.hbm [resolvable:$true] %s12
      %s14 = sshll.u32 [#allocation2], 4
      %s15 = int_to_ptr.vmem [resolvable:$true] %s14
      %20 = dma.hbm_to_vmem [thread:$0]  %s13, 4096, %s15, [#allocation3], 128, 128, 8
    $region5: #{tpu_custom_call.1} parent=1 // pred_fallthru
      _
    // Predicated region
    $region6: #{tpu_custom_call.1} parent=1 // pred_check
      _
    $region7: #{tpu_custom_call.1} parent=1 // pred_check_branch
      %22 = sbr.rel (0) target = $region9
    $region8: #{tpu_custom_call.1} parent=1 // pred_region
      %24 = dma.done [#allocation3], 4096
    $region9: #{tpu_custom_call.1} parent=1 // pred_fallthru
      _
    %v25 = vld [vmem:[#allocation2] ss:$2 sm:$0xff]
    %s26 = scalar_lea.vmem [#allocation2], 32
    %v27 = vld [vmem:[%s26] ss:$2 sm:$0xff]
    %s28 = scalar_lea.vmem [#allocation2], 64
    %v29 = vld [vmem:[%s28] ss:$2 sm:$0xff]
    %s30 = scalar_lea.vmem [#allocation2], 96
    %v31 = vld [vmem:[%s30] ss:$2 sm:$0xff]
    %s32 = scalar_lea.vmem [#allocation2], 128
    %v33 = vld [vmem:[%s32] ss:$2 sm:$0xff]
    %s34 = scalar_lea.vmem [#allocation2], 160
    %v35 = vld [vmem:[%s34] ss:$2 sm:$0xff]
    %s36 = scalar_lea.vmem [#allocation2], 192
    %v37 = vld [vmem:[%s36] ss:$2 sm:$0xff]
    %s38 = scalar_lea.vmem [#allocation2], 224
    %v39 = vld [vmem:[%s38] ss:$2 sm:$0xff]
    %v40 = vmul.f32 %v25, %v25
    %v41 = vmul.f32 %v27, %v27
    %v42 = vmul.f32 %v29, %v29
    %v43 = vmul.f32 %v31, %v31
    %v44 = vmul.f32 %v33, %v33
    %v45 = vmul.f32 %v35, %v35
    %v46 = vmul.f32 %v37, %v37
    %v47 = vmul.f32 %v39, %v39
    %s48 = scalar_lea.vmem [#allocation2], 1
    %v49 = vld [vmem:[%s48] ss:$2 sm:$0xff]
    %s50 = scalar_lea.vmem [#allocation2], 33
    %v51 = vld [vmem:[%s50] ss:$2 sm:$0xff]
    %s52 = scalar_lea.vmem [#allocation2], 65
    %v53 = vld [vmem:[%s52] ss:$2 sm:$0xff]
    %s54 = scalar_lea.vmem [#allocation2], 97
    %v55 = vld [vmem:[%s54] ss:$2 sm:$0xff]
    %s56 = scalar_lea.vmem [#allocation2], 129
    %v57 = vld [vmem:[%s56] ss:$2 sm:$0xff]
    %s58 = scalar_lea.vmem [#allocation2], 161
    %v59 = vld [vmem:[%s58] ss:$2 sm:$0xff]
    %s60 = scalar_lea.vmem [#allocation2], 193
    %v61 = vld [vmem:[%s60] ss:$2 sm:$0xff]
    %s62 = scalar_lea.vmem [#allocation2], 225
    %v63 = vld [vmem:[%s62] ss:$2 sm:$0xff]
    %v64 = vmul.f32 %v49, %v49
    %v65 = vmul.f32 %v51, %v51
    %v66 = vmul.f32 %v53, %v53
    %v67 = vmul.f32 %v55, %v55
    %v68 = vmul.f32 %v57, %v57
    %v69 = vmul.f32 %v59, %v59
    %v70 = vmul.f32 %v61, %v61
    %v71 = vmul.f32 %v63, %v63
    %v72 = vadd.f32 %v40, %v64
    %v73 = vadd.f32 %v41, %v65
    %v74 = vadd.f32 %v42, %v66
    %v75 = vadd.f32 %v43, %v67
    %v76 = vadd.f32 %v44, %v68
    %v77 = vadd.f32 %v45, %v69
    %v78 = vadd.f32 %v46, %v70
    %v79 = vadd.f32 %v47, %v71
    %s80 = scalar_lea.vmem [#allocation2], 16
    %v81 = vld [vmem:[%s80] ss:$2 sm:$0xff]
    %s82 = scalar_lea.vmem %s80, 32 [#allocation2]
    %v83 = vld [vmem:[%s82] ss:$2 sm:$0xff]
    %s84 = scalar_lea.vmem %s80, 64 [#allocation2]
    %v85 = vld [vmem:[%s84] ss:$2 sm:$0xff]
    %s86 = scalar_lea.vmem %s80, 96 [#allocation2]
    %v87 = vld [vmem:[%s86] ss:$2 sm:$0xff]
    %s88 = scalar_lea.vmem %s80, 128 [#allocation2]
    %v89 = vld [vmem:[%s88] ss:$2 sm:$0xff]
    %s90 = scalar_lea.vmem %s80, 160 [#allocation2]
    %v91 = vld [vmem:[%s90] ss:$2 sm:$0xff]
    %s92 = scalar_lea.vmem %s80, 192 [#allocation2]
    %v93 = vld [vmem:[%s92] ss:$2 sm:$0xff]
    %s94 = scalar_lea.vmem %s80, 224 [#allocation2]
    %v95 = vld [vmem:[%s94] ss:$2 sm:$0xff]
    %v96 = vmul.f32 %v81, %v81
    %v97 = vmul.f32 %v83, %v83
    %v98 = vmul.f32 %v85, %v85
    %v99 = vmul.f32 %v87, %v87
    %v100 = vmul.f32 %v89, %v89
    %v101 = vmul.f32 %v91, %v91
    %v102 = vmul.f32 %v93, %v93
    %v103 = vmul.f32 %v95, %v95
    %v104 = vadd.f32 %v72, %v96
    %v105 = vadd.f32 %v73, %v97
    %v106 = vadd.f32 %v74, %v98
    %v107 = vadd.f32 %v75, %v99
    %v108 = vadd.f32 %v76, %v100
    %v109 = vadd.f32 %v77, %v101
    %v110 = vadd.f32 %v78, %v102
    %v111 = vadd.f32 %v79, %v103
    %s112 = scalar_lea.vmem %s80, 1 [#allocation2]
    %v113 = vld [vmem:[%s112] ss:$2 sm:$0xff]
    %s114 = scalar_lea.vmem %s80, 33 [#allocation2]
    %v115 = vld [vmem:[%s114] ss:$2 sm:$0xff]
    %s116 = scalar_lea.vmem %s80, 65 [#allocation2]
    %v117 = vld [vmem:[%s116] ss:$2 sm:$0xff]
    %s118 = scalar_lea.vmem %s80, 97 [#allocation2]
    %v119 = vld [vmem:[%s118] ss:$2 sm:$0xff]
    %s120 = scalar_lea.vmem %s80, 129 [#allocation2]
    %v121 = vld [vmem:[%s120] ss:$2 sm:$0xff]
    %s122 = scalar_lea.vmem %s80, 161 [#allocation2]
    %v123 = vld [vmem:[%s122] ss:$2 sm:$0xff]
    %s124 = scalar_lea.vmem %s80, 193 [#allocation2]
    %v125 = vld [vmem:[%s124] ss:$2 sm:$0xff]
    %s126 = scalar_lea.vmem %s80, 225 [#allocation2]
    %v127 = vld [vmem:[%s126] ss:$2 sm:$0xff]
    %v128 = vmul.f32 %v113, %v113
    %v129 = vmul.f32 %v115, %v115
    %v130 = vmul.f32 %v117, %v117
    %v131 = vmul.f32 %v119, %v119
    %v132 = vmul.f32 %v121, %v121
    %v133 = vmul.f32 %v123, %v123
    %v134 = vmul.f32 %v125, %v125
    %v135 = vmul.f32 %v127, %v127
    %v136 = vadd.f32 %v104, %v128
    %v137 = vadd.f32 %v105, %v129
    %v138 = vadd.f32 %v106, %v130
    %v139 = vadd.f32 %v107, %v131
    %v140 = vadd.f32 %v108, %v132
    %v141 = vadd.f32 %v109, %v133
    %v142 = vadd.f32 %v110, %v134
    %v143 = vadd.f32 %v111, %v135
    %v144 = vrsqrt.pop %v136
    %v145 = vmul.f32 %v144, %v136
    %v146 = vmul.f32 %v145, %v144
    %v147 = vmul.f32 0.5, %v146
    %v148 = vsub.f32 1.5, %v147
    %v149 = vmul.f32 %v144, %v148
    %v150 = vmul.f32 %v136, %v149
    %vm151 = vcmp.eq.f32.partialorder %v136, inf
    %v152 = vsel %vm151, %v136, %v150
    %vm153 = vcmp.eq.f32.partialorder %v136, 0.0
    %v154 = vand.u32 %v136, 2147483648
    %v155 = vsel %vm153, %v154, %v152
    %v156 = vrsqrt.pop %v137
    %v157 = vmul.f32 %v156, %v137
    %v158 = vmul.f32 %v157, %v156
    %v159 = vmul.f32 0.5, %v158
    %v160 = vsub.f32 1.5, %v159
    %v161 = vmul.f32 %v156, %v160
    %v162 = vmul.f32 %v137, %v161
    %vm163 = vcmp.eq.f32.partialorder %v137, inf
    %v164 = vsel %vm163, %v137, %v162
    %vm165 = vcmp.eq.f32.partialorder %v137, 0.0
    %v166 = vand.u32 %v137, 2147483648
    %v167 = vsel %vm165, %v166, %v164
    %v168 = vrsqrt.pop %v138
    %v169 = vmul.f32 %v168, %v138
    %v170 = vmul.f32 %v169, %v168
    %v171 = vmul.f32 0.5, %v170
    %v172 = vsub.f32 1.5, %v171
    %v173 = vmul.f32 %v168, %v172
    %v174 = vmul.f32 %v138, %v173
    %vm175 = vcmp.eq.f32.partialorder %v138, inf
    %v176 = vsel %vm175, %v138, %v174
    %vm177 = vcmp.eq.f32.partialorder %v138, 0.0
    %v178 = vand.u32 %v138, 2147483648
    %v179 = vsel %vm177, %v178, %v176
    %v180 = vrsqrt.pop %v139
    %v181 = vmul.f32 %v180, %v139
    %v182 = vmul.f32 %v181, %v180
    %v183 = vmul.f32 0.5, %v182
    %v184 = vsub.f32 1.5, %v183
    %v185 = vmul.f32 %v180, %v184
    %v186 = vmul.f32 %v139, %v185
    %vm187 = vcmp.eq.f32.partialorder %v139, inf
    %v188 = vsel %vm187, %v139, %v186
    %vm189 = vcmp.eq.f32.partialorder %v139, 0.0
    %v190 = vand.u32 %v139, 2147483648
    %v191 = vsel %vm189, %v190, %v188
    %v192 = vrsqrt.pop %v140
    %v193 = vmul.f32 %v192, %v140
    %v194 = vmul.f32 %v193, %v192
    %v195 = vmul.f32 0.5, %v194
    %v196 = vsub.f32 1.5, %v195
    %v197 = vmul.f32 %v192, %v196
    %v198 = vmul.f32 %v140, %v197
    %vm199 = vcmp.eq.f32.partialorder %v140, inf
    %v200 = vsel %vm199, %v140, %v198
    %vm201 = vcmp.eq.f32.partialorder %v140, 0.0
    %v202 = vand.u32 %v140, 2147483648
    %v203 = vsel %vm201, %v202, %v200
    %v204 = vrsqrt.pop %v141
    %v205 = vmul.f32 %v204, %v141
    %v206 = vmul.f32 %v205, %v204
    %v207 = vmul.f32 0.5, %v206
    %v208 = vsub.f32 1.5, %v207
    %v209 = vmul.f32 %v204, %v208
    %v210 = vmul.f32 %v141, %v209
    %vm211 = vcmp.eq.f32.partialorder %v141, inf
    %v212 = vsel %vm211, %v141, %v210
    %vm213 = vcmp.eq.f32.partialorder %v141, 0.0
    %v214 = vand.u32 %v141, 2147483648
    %v215 = vsel %vm213, %v214, %v212
    %v216 = vrsqrt.pop %v142
    %v217 = vmul.f32 %v216, %v142
    %v218 = vmul.f32 %v217, %v216
    %v219 = vmul.f32 0.5, %v218
    %v220 = vsub.f32 1.5, %v219
    %v221 = vmul.f32 %v216, %v220
    %v222 = vmul.f32 %v142, %v221
    %vm223 = vcmp.eq.f32.partialorder %v142, inf
    %v224 = vsel %vm223, %v142, %v222
    %vm225 = vcmp.eq.f32.partialorder %v142, 0.0
    %v226 = vand.u32 %v142, 2147483648
    %v227 = vsel %vm225, %v226, %v224
    %v228 = vrsqrt.pop %v143
    %v229 = vmul.f32 %v228, %v143
    %v230 = vmul.f32 %v229, %v228
    %v231 = vmul.f32 0.5, %v230
    %v232 = vsub.f32 1.5, %v231
    %v233 = vmul.f32 %v228, %v232
    %v234 = vmul.f32 %v143, %v233
    %vm235 = vcmp.eq.f32.partialorder %v143, inf
    %v236 = vsel %vm235, %v143, %v234
    %vm237 = vcmp.eq.f32.partialorder %v143, 0.0
    %v238 = vand.u32 %v143, 2147483648
    %v239 = vsel %vm237, %v238, %v236
    %240 = vst [vmem:[#allocation5] sm:$0xff] %v155
    %241 = vst [vmem:[#allocation5 + $0x8] sm:$0xff] %v167
    %242 = vst [vmem:[#allocation5 + $0x10] sm:$0xff] %v179
    %243 = vst [vmem:[#allocation5 + $0x18] sm:$0xff] %v191
    %244 = vst [vmem:[#allocation5 + $0x20] sm:$0xff] %v203
    %245 = vst [vmem:[#allocation5 + $0x28] sm:$0xff] %v215
    %246 = vst [vmem:[#allocation5 + $0x30] sm:$0xff] %v227
    %247 = vst [vmem:[#allocation5 + $0x38] sm:$0xff] %v239
    // Predicated region
    $region10: #{tpu_custom_call.1} parent=1 // pred_check
      _
    $region11: #{tpu_custom_call.1} parent=1 // pred_check_branch
      %249 = sbr.rel (0) target = $region13
    $region12: #{tpu_custom_call.1} parent=1 // pred_region
      %251 = vsyncadd [#allocation4], 0
      %s252 = sshll.u32 [#allocation5], 4
      %s253 = int_to_ptr.vmem [resolvable:$true] %s252
      %s254 = sshll.u32 %s1, 4
      %s255 = int_to_ptr.hbm [resolvable:$true] %s254
      %260 = dma.vmem_to_hbm [thread:$0]  %s253, 1024, %s255, [#allocation4], 128, 128, 8
    $region13: #{tpu_custom_call.1} parent=1 // pred_fallthru
      _
    // Predicated region
    $region14: #{tpu_custom_call.1} parent=1 // pred_check
      _
    $region15: #{tpu_custom_call.1} parent=1 // pred_check_branch
      %262 = sbr.rel (0) target = $region17
    $region16: #{tpu_custom_call.1} parent=1 // pred_region
      %264 = dma.done [#allocation4], 1024
    $region17: #{tpu_custom_call.1} parent=1 // pred_fallthru
      _
    %265 = vsyncpa [#allocation3], 1
    %266 = vsyncpa [#allocation4], 1

</llo_original>
